<compile_context>
chip_gen: v6e
topology: v6e:2x2x1
jax: 0.10.0
libtpu: 0.0.40
codegen_flags: <defaults>
</compile_context>

<pallas_src>
import functools

import jax
import jax.numpy as jnp
from jax.experimental import pallas as pl
from jax.experimental.pallas import tpu as pltpu

LANE = 128            # TPU lane width (last dim of a vreg)
SUBL = 8              # f32 sublanes per vreg
MAX_BLOCK_ROWS = 1024 # 1024 x 128 f32 = 512 KiB per input per grid step
NUM_CORES = 2         # split the sum reduction across 2 TCs (v7x); free elsewhere


def _smooth_l1(diff, beta):
    """Elementwise smooth-L1 in f32 (matches F.smooth_l1_loss semantics)."""
    abs_d = jnp.abs(diff)
    if beta <= 0.0:
        return abs_d                      # beta == 0 degenerates to pure L1
    inv_half_beta = 0.5 / beta            # Python constant: no per-element divide
    return jnp.where(abs_d < beta, diff * diff * inv_half_beta, abs_d - 0.5 * beta)


def _elem_kernel(pred_ref, targ_ref, out_ref, *, beta, loss_weight):
    """reduction='none': fused loss_weight scale + cast to the output dtype."""
    diff = pred_ref[...].astype(jnp.float32) - targ_ref[...].astype(jnp.float32)
    loss = _smooth_l1(diff, beta)
    if loss_weight != 1.0:
        loss = loss * loss_weight
    out_ref[...] = loss.astype(out_ref.dtype)


def _sum_kernel(pred_ref, targ_ref, out_ref, *,
                beta, scale, block_rows, total_rows, steps, need_mask):
    """reduction='mean'/'sum': accumulate per-core (8,128) f32 partials."""
    j = pl.program_id(1)

    @pl.when(j == 0)
    def _():
        out_ref[...] = jnp.zeros_like(out_ref)

    diff = pred_ref[...].astype(jnp.float32) - targ_ref[...].astype(jnp.float32)
    loss = _smooth_l1(diff, beta)

    if need_mask:
        c = pl.program_id(0)
        start_row = (c * steps + j) * block_rows
        remaining = total_rows - start_row          # may be <= 0 for dup blocks
        row_idx = jax.lax.broadcasted_iota(jnp.int32, (block_rows, LANE), 0)
        loss = jnp.where(row_idx < remaining, loss, 0.0)

    # VPU-only partial reduction: collapse the block onto one (8,128) vreg.
    out_ref[...] += jnp.sum(loss.reshape(block_rows // SUBL, SUBL, LANE), axis=0)

    if scale != 1.0:
        @pl.when(j == pl.num_programs(1) - 1)
        def _():
            out_ref[...] = out_ref[...] * scale


def _as_lane_slab(x):
    """View x as a [rows, 128] slab.

    Free (no HBM copy) when x.size is a multiple of 128 and >= 8*128; otherwise
    a tiny zero-pad (padding contributes zero loss since both operands pad 0).
    """
    flat = x.reshape(-1)
    n = flat.shape[0]
    padded = max(SUBL * LANE, ((n + LANE - 1) // LANE) * LANE)
    if padded != n:
        flat = jnp.pad(flat, (0, padded - n))
    return flat.reshape(padded // LANE, LANE), n


def smooth_l1_loss(pred, target, *, beta=1.0, reduction="mean", loss_weight=1.0):
    """JAX/Pallas equivalent of the PyTorch SmoothL1Loss module forward."""
    assert pred.shape == target.shape, "pred and target must have the same shape"
    if beta < 0:
        raise ValueError("beta must be non-negative")
    if reduction not in ("none", "mean", "sum"):
        raise ValueError(f"unsupported reduction: {reduction}")

    orig_shape = pred.shape
    orig_dtype = pred.dtype

    p2d, n = _as_lane_slab(pred)
    t2d, _ = _as_lane_slab(target)
    rows = p2d.shape[0]

    block_rows = min(MAX_BLOCK_ROWS, (rows // SUBL) * SUBL)   # multiple of 8, <= rows
    nblocks = (rows + block_rows - 1) // block_rows

    if reduction == "none":
        out2d = pl.pallas_call(
            functools.partial(_elem_kernel, beta=float(beta),
                              loss_weight=float(loss_weight)),
            out_shape=jax.ShapeDtypeStruct((rows, LANE), orig_dtype),
            grid=(nblocks,),
            in_specs=[pl.BlockSpec((block_rows, LANE), lambda i: (i, 0)),
                      pl.BlockSpec((block_rows, LANE), lambda i: (i, 0))],
            out_specs=pl.BlockSpec((block_rows, LANE), lambda i: (i, 0)),
            compiler_params=pltpu.CompilerParams(
                dimension_semantics=("parallel",)),
        )(p2d, t2d)
        if rows * LANE == n:
            return out2d.reshape(orig_shape)
        return out2d.reshape(-1)[:n].reshape(orig_shape)

    # mean / sum
    scale = float(loss_weight)
    if reduction == "mean":
        scale /= float(n)

    nc = NUM_CORES if nblocks >= NUM_CORES else 1
    steps = (nblocks + nc - 1) // nc
    need_mask = (rows % block_rows != 0) or (nc * steps != nblocks)

    def in_map(c, j):
        b = c * steps + j
        if nc * steps != nblocks:
            # Duplicated tail blocks are fully masked out in the kernel.
            b = jnp.minimum(b, nblocks - 1)
        return (b, 0)

    partials = pl.pallas_call(
        functools.partial(_sum_kernel, beta=float(beta), scale=scale,
                          block_rows=block_rows, total_rows=rows,
                          steps=steps, need_mask=need_mask),
        out_shape=jax.ShapeDtypeStruct((nc * SUBL, LANE), jnp.float32),
        grid=(nc, steps),
        in_specs=[pl.BlockSpec((block_rows, LANE), in_map),
                  pl.BlockSpec((block_rows, LANE), in_map)],
        out_specs=pl.BlockSpec((SUBL, LANE), lambda c, j: (c, 0)),
        compiler_params=pltpu.CompilerParams(
            dimension_semantics=("parallel", "arbitrary")),
    )(p2d, t2d)

    return jnp.sum(partials).astype(orig_dtype)


def _reference(pred, target, *, beta=1.0, reduction="mean", loss_weight=1.0):
    diff = pred.astype(jnp.float32) - target.astype(jnp.float32)
    ad = jnp.abs(diff)
    if beta <= 0.0:
        loss = ad
    else:
        loss = jnp.where(ad < beta, 0.5 * diff * diff / beta, ad - 0.5 * beta)
    if reduction == "mean":
        loss = jnp.mean(loss)
    elif reduction == "sum":
        loss = jnp.sum(loss)
    return (loss * loss_weight).astype(pred.dtype)


if __name__ == "__main__":
    key = jax.random.PRNGKey(0)
    ok = True
    # (shape, beta, loss_weight):
    #  * primary bbox-regression-like case (single aligned block)
    #  * ragged numel (tiny pad path)
    #  * partial last block + 2-core reduction split
    #  * nblocks not divisible by core count (clamped duplicate block path)
    cases = [((2, 4, 16, 16), 1.0, 1.0),
             ((3, 4, 5, 7), 1.0, 1.0),
             ((2, 4, 128, 130), 0.5, 2.0),
             ((2, 4, 210, 160), 1.0, 1.5)]
    for shape, beta, lw in cases:
        key, kp, kt = jax.random.split(key, 3)
        pred = jax.random.normal(kp, shape, dtype=jnp.float32)
        target = jax.random.normal(kt, shape, dtype=jnp.float32)
        for reduction in ("mean", "sum", "none"):
            out = smooth_l1_loss(pred, target, beta=beta, reduction=reduction,
                                 loss_weight=lw)
            jax.block_until_ready(out)
            ref = _reference(pred, target, beta=beta, reduction=reduction,
                             loss_weight=lw)
            ok &= bool(jnp.allclose(out, ref, atol=1e-4, rtol=1e-5))
    print("KERNEL_OK" if ok else "KERNEL_MISMATCH")
</pallas_src>

<mosaic_0001>
module attributes {stable_mosaic.version = 11 : i64} {
  func.func @_sum_kernel(%arg0: i32, %arg1: i32, %arg2: memref<16x128xf32, #tpu.memory_space<vmem>>, %arg3: memref<16x128xf32, #tpu.memory_space<vmem>>, %arg4: memref<8x128xf32, #tpu.memory_space<vmem>>) attributes {dimension_semantics = [#tpu.dimension_semantics<parallel>, #tpu.dimension_semantics<arbitrary>], iteration_bounds = array<i64: 1, 1>, scalar_prefetch = 0 : i64, scratch_operands = 0 : i64, tpu.core_type = #tpu.core_type<tc>, window_params = [{transform_indices = @transform_0, window_bounds = array<i64: 16, 128>}, {transform_indices = @transform_1, window_bounds = array<i64: 16, 128>}, {transform_indices = @transform_2, window_bounds = array<i64: 8, 128>}]} {
    %c0_i32 = arith.constant 0 : i32
    %0 = arith.cmpi eq, %arg1, %c0_i32 : i32
    %1 = arith.extui %0 : i1 to i32
    %c0_i32_0 = arith.constant 0 : i32
    %2 = arith.cmpi ne, %1, %c0_i32_0 : i32
    scf.if %2 {
      %cst_13 = arith.constant 0.000000e+00 : f32
      %23 = vector.broadcast %cst_13 : f32 to vector<8x128xf32>
      %c0_14 = arith.constant 0 : index
      %c0_15 = arith.constant 0 : index
      %24 = vector.load %arg4[%c0_14, %c0_15] : memref<8x128xf32, #tpu.memory_space<vmem>>, vector<8x128xf32>
      tpu.vector_store %arg4[%c0_14, %c0_15], %23 {strides = array<i32>} : memref<8x128xf32, #tpu.memory_space<vmem>>, vector<8x128xf32>,
    } else {
    }
    %c0 = arith.constant 0 : index
    %c0_1 = arith.constant 0 : index
    %3 = vector.load %arg2[%c0, %c0_1] : memref<16x128xf32, #tpu.memory_space<vmem>>, vector<16x128xf32>
    %c0_2 = arith.constant 0 : index
    %c0_3 = arith.constant 0 : index
    %4 = vector.load %arg3[%c0_2, %c0_3] : memref<16x128xf32, #tpu.memory_space<vmem>>, vector<16x128xf32>
    %5 = arith.subf %3, %4 : vector<16x128xf32>
    %6 = math.absf %5 : vector<16x128xf32>
    %cst = arith.constant 1.000000e+00 : f32
    %7 = vector.broadcast %cst : f32 to vector<16x128xf32>
    %8 = arith.cmpf olt, %6, %7 : vector<16x128xf32>
    %9 = arith.mulf %5, %5 : vector<16x128xf32>
    %cst_4 = arith.constant 5.000000e-01 : f32
    %10 = vector.broadcast %cst_4 : f32 to vector<16x128xf32>
    %11 = arith.mulf %9, %10 : vector<16x128xf32>
    %cst_5 = arith.constant 5.000000e-01 : f32
    %12 = vector.broadcast %cst_5 : f32 to vector<16x128xf32>
    %13 = arith.subf %6, %12 : vector<16x128xf32>
    %14 = arith.select %8, %11, %13 : vector<16x128xi1>, vector<16x128xf32>
    %c0_6 = arith.constant 0 : index
    %c0_7 = arith.constant 0 : index
    %15 = vector.load %arg4[%c0_6, %c0_7] : memref<8x128xf32, #tpu.memory_space<vmem>>, vector<8x128xf32>
    %16 = vector.shape_cast %14 : vector<16x128xf32> to vector<2x8x128xf32>
    %cst_8 = arith.constant dense<0.000000e+00> : vector<8x128xf32>
    %17 = vector.multi_reduction <add>, %16, %cst_8 [0] : vector<2x8x128xf32> to vector<8x128xf32>
    %18 = arith.addf %15, %17 : vector<8x128xf32>
    %c0_9 = arith.constant 0 : index
    %c0_10 = arith.constant 0 : index
    %19 = vector.load %arg4[%c0_9, %c0_10] : memref<8x128xf32, #tpu.memory_space<vmem>>, vector<8x128xf32>
    tpu.vector_store %arg4[%c0_9, %c0_10], %18 {strides = array<i32>} : memref<8x128xf32, #tpu.memory_space<vmem>>, vector<8x128xf32>,
    %c0_i32_11 = arith.constant 0 : i32
    %20 = arith.cmpi eq, %arg1, %c0_i32_11 : i32
    %21 = arith.extui %20 : i1 to i32
    %c0_i32_12 = arith.constant 0 : i32
    %22 = arith.cmpi ne, %21, %c0_i32_12 : i32
    scf.if %22 {
      %c0_13 = arith.constant 0 : index
      %c0_14 = arith.constant 0 : index
      %23 = vector.load %arg4[%c0_13, %c0_14] : memref<8x128xf32, #tpu.memory_space<vmem>>, vector<8x128xf32>
      %cst_15 = arith.constant 4.8828125E-4 : f32
      %24 = vector.broadcast %cst_15 : f32 to vector<8x128xf32>
      %25 = arith.mulf %23, %24 : vector<8x128xf32>
      %c0_16 = arith.constant 0 : index
      %c0_17 = arith.constant 0 : index
      %26 = vector.load %arg4[%c0_16, %c0_17] : memref<8x128xf32, #tpu.memory_space<vmem>>, vector<8x128xf32>
      tpu.vector_store %arg4[%c0_16, %c0_17], %25 {strides = array<i32>} : memref<8x128xf32, #tpu.memory_space<vmem>>, vector<8x128xf32>,
    } else {
    }
    return
  }
  func.func @transform_0(%arg0: i32, %arg1: i32) -> (i32, i32) {
    %c1_i32 = arith.constant 1 : i32
    %0 = arith.muli %arg0, %c1_i32 : i32
    %1 = arith.addi %0, %arg1 : i32
    %c0_i32 = arith.constant 0 : i32
    %c0_i32_0 = arith.constant 0 : i32
    return %1, %c0_i32 : i32, i32
  }
  func.func @transform_1(%arg0: i32, %arg1: i32) -> (i32, i32) {
    %c1_i32 = arith.constant 1 : i32
    %0 = arith.muli %arg0, %c1_i32 : i32
    %1 = arith.addi %0, %arg1 : i32
    %c0_i32 = arith.constant 0 : i32
    %c0_i32_0 = arith.constant 0 : i32
    return %1, %c0_i32 : i32, i32
  }
  func.func @transform_2(%arg0: i32, %arg1: i32) -> (i32, i32) {
    %c0_i32 = arith.constant 0 : i32
    %c0_i32_0 = arith.constant 0 : i32
    return %arg0, %c0_i32 : i32, i32
  }
}

</mosaic_0001>

<llo_original>
// kernel: tpu_custom_call.1
$region0: #{tpu_custom_call.1}
  #allocation0 [shape = 'u32[]', space=smem, size = 0x4, offset = 0x4, fixed_abs, tag = 'smem constant byte address 0x4 - core index']
  #allocation1 [shape = 'u32[144,128]{1,0:T(1,128)}', space=vmem, size = 0x12000, scoped, tag = 'internal scratch']
  %s0 = inlined_call_operand.hbm [shape: f32[16,128], index: 0, kind: input, shape index: {}]
  %s1 = inlined_call_operand.hbm [shape: f32[16,128], index: 1, kind: input, shape index: {}]
  %s2 = inlined_call_operand.hbm [shape: f32[8,128], index: 2, kind: output, shape index: {}]
  %s3 = sld [smem:[#allocation0]]
  $region34: #{tpu_custom_call.1} parent=0
    _
  %s5 = ssub.s32 1, %s3
  %s6 = scalar_select 0, %s5, %s3
  $region1: #{tpu_custom_call.1} parent=0
    #allocation2 [shape = 'u8[8192]{0}', space=vmem, size = 0x2000, scoped, tag = 'input window, operand 0, single buffered']
    #allocation3 [shape = 's32[1]{0}', space=sflag, size = 0x4, scoped, tag = 'scoped memory for tpu_custom_call.1']
    #allocation4 [shape = 's32[1]{0}', space=sflag, size = 0x4, scoped, tag = 'scoped memory for tpu_custom_call.1']
    #allocation5 [shape = 'u8[8192]{0}', space=vmem, size = 0x2000, scoped, tag = 'input window, operand 1, single buffered']
    #allocation6 [shape = 's32[1]{0}', space=sflag, size = 0x4, scoped, tag = 'scoped memory for tpu_custom_call.1']
    #allocation7 [shape = 'u8[4096]{0}', space=vmem, size = 0x1000, scoped, tag = 'output window, operand 0, single buffered']
    %7 = vsyncpa [#allocation3], 0
    %8 = vsyncpa [#allocation6], 0
    %9 = vsyncpa [#allocation4], 0
    // Predicated region
    $region2: #{tpu_custom_call.1} parent=1 // pred_check
      _
    $region3: #{tpu_custom_call.1} parent=1 // pred_check_branch
      %11 = sbr.rel (0) target = $region5
    $region4: #{tpu_custom_call.1} parent=1 // pred_region
      %s12 = sadd.s32 0, 0
      %s13 = smul.u32 2, %s12
      %s15 = ssub.s32 256, 256
      %16 = vsyncadd [#allocation3], %s15
      %s17 = smul.addr %s13, 128
      %s18 = scalar_lea.hbm %s0, %s17
      %s19 = sshll.u32 [#allocation2], 4
      %s20 = int_to_ptr.vmem [resolvable:$true] %s19
      %25 = dma.hbm_to_vmem [thread:$0]  %s18, 256, %s20, [#allocation3], 128, 128, 8
    $region5: #{tpu_custom_call.1} parent=1 // pred_fallthru
      _
    // Predicated region
    $region6: #{tpu_custom_call.1} parent=1 // pred_check
      _
    $region7: #{tpu_custom_call.1} parent=1 // pred_check_branch
      %27 = sbr.rel (0) target = $region9
    $region8: #{tpu_custom_call.1} parent=1 // pred_region
      %s28 = sadd.s32 0, 0
      %s29 = smul.u32 2, %s28
      %s31 = ssub.s32 256, 256
      %32 = vsyncadd [#allocation6], %s31
      %s33 = smul.addr %s29, 128
      %s34 = scalar_lea.hbm %s1, %s33
      %s35 = sshll.u32 [#allocation5], 4
      %s36 = int_to_ptr.vmem [resolvable:$true] %s35
      %41 = dma.hbm_to_vmem [thread:$0]  %s34, 256, %s36, [#allocation6], 128, 128, 8
    $region9: #{tpu_custom_call.1} parent=1 // pred_fallthru
      _
    // Predicated region
    $region10: #{tpu_custom_call.1} parent=1 // pred_check
      _
    $region11: #{tpu_custom_call.1} parent=1 // pred_check_branch
      %43 = sbr.rel (0) target = $region13
    $region12: #{tpu_custom_call.1} parent=1 // pred_region
      %44 = dma.done [#allocation3], 256
    $region13: #{tpu_custom_call.1} parent=1 // pred_fallthru
      _
    // Predicated region
    $region14: #{tpu_custom_call.1} parent=1 // pred_check
      _
    $region15: #{tpu_custom_call.1} parent=1 // pred_check_branch
      %46 = sbr.rel (0) target = $region17
    $region16: #{tpu_custom_call.1} parent=1 // pred_region
      %47 = dma.done [#allocation6], 256
    $region17: #{tpu_custom_call.1} parent=1 // pred_fallthru
      _
    %s48 = sadd.s32 0, 0
    %s49 = smul.u32 2, %s48
    %s50 = sadd.s32 0, 0
    %s51 = smul.u32 2, %s50
    %p52 = scmp.eq.s32.totalorder 0, 0
    // Predicated region
    $region18: #{tpu_custom_call.1} parent=1 // pred_check
      %p53 = pneg %p52
    $region19: #{tpu_custom_call.1} parent=1 // pred_check_branch
      %55 = sbr.rel (%p53) target = $region21
    $region20: #{tpu_custom_call.1} parent=1 // pred_region
      %56 = vst [vmem:[#allocation7] sm:$0xff] 0.0
    $region21: #{tpu_custom_call.1} parent=1 // pred_fallthru
      _
    %v57 = vld [vmem:[#allocation2] sm:$0xff]
    %v58 = vld [vmem:[#allocation2 + $0x8] sm:$0xff]
    %v59 = vld [vmem:[#allocation5] sm:$0xff]
    %v60 = vld [vmem:[#allocation5 + $0x8] sm:$0xff]
    %v61 = vsub.f32 %v57, %v59
    %v62 = vsub.f32 %v58, %v60
    %v63 = vand.u32 2147483647, %v61
    %v64 = vand.u32 2147483647, %v62
    %vm65 = vcmp.lt.f32.partialorder %v63, 1.0
    %vm66 = vcmp.lt.f32.partialorder %v64, 1.0
    %v67 = vmul.f32 %v61, %v61
    %v68 = vmul.f32 %v62, %v62
    %v69 = vmul.f32 %v67, 0.5
    %v70 = vmul.f32 %v68, 0.5
    %v71 = vsub.f32 %v63, 0.5
    %v72 = vsub.f32 %v64, 0.5
    %v73 = vsel %vm65, %v69, %v71
    %v74 = vsel %vm66, %v70, %v72
    %v75 = vld [vmem:[#allocation7] sm:$0xff]
    %v76 = vadd.f32 %v73, %v74
    %v77 = vadd.f32 %v75, %v76
    %78 = vst [vmem:[#allocation7] sm:$0xff] %v77
    // Predicated region
    $region22: #{tpu_custom_call.1} parent=1 // pred_check
      %p79 = pneg %p52
    $region23: #{tpu_custom_call.1} parent=1 // pred_check_branch
      %81 = sbr.rel (%p79) target = $region25
    $region24: #{tpu_custom_call.1} parent=1 // pred_region
      %v82 = vld [vmem:[#allocation7] sm:$0xff]
      %v83 = vmul.f32 %v82, 0.00048828125
      %84 = vst [vmem:[#allocation7] sm:$0xff] %v83
    $region25: #{tpu_custom_call.1} parent=1 // pred_fallthru
      _
    // Predicated region
    $region26: #{tpu_custom_call.1} parent=1 // pred_check
      _
    $region27: #{tpu_custom_call.1} parent=1 // pred_check_branch
      %86 = sbr.rel (0) target = $region29
    $region28: #{tpu_custom_call.1} parent=1 // pred_region
      %s88 = ssub.s32 128, 128
      %89 = vsyncadd [#allocation4], %s88
      %s91 = sshll.u32 [#allocation7], 4
      %s92 = int_to_ptr.vmem [resolvable:$true] %s91
      %94 = dma.vmem_to_hbm [thread:$0]  %s92, 128, %s2, [#allocation4]
    $region29: #{tpu_custom_call.1} parent=1 // pred_fallthru
      _
    // Predicated region
    $region30: #{tpu_custom_call.1} parent=1 // pred_check
      _
    $region31: #{tpu_custom_call.1} parent=1 // pred_check_branch
      %96 = sbr.rel (0) target = $region33
    $region32: #{tpu_custom_call.1} parent=1 // pred_region
      %97 = dma.done [#allocation4], 128
    $region33: #{tpu_custom_call.1} parent=1 // pred_fallthru
      _
    %98 = vsyncpa [#allocation3], 1
    %99 = vsyncpa [#allocation6], 1
    %100 = vsyncpa [#allocation4], 1

</llo_original>
